<compile_context>
chip_gen: v7x
topology: tpu7x:2x2x1
jax: 0.10.0
libtpu: 0.0.40
codegen_flags: <defaults>
</compile_context>

<pallas_src>
import math

import jax
import jax.numpy as jnp
from jax.experimental import pallas as pl
from jax.experimental.pallas import tpu as pltpu


LAGRANGIAN_BETA = 0.001


# ----------------------------------------------------------------------------
# host-side schedule / basis helpers (tiny setup glue, matches the PyTorch ref)
# ----------------------------------------------------------------------------
def get_frequency_scaling(img_dim, sigma_t=1.0, min_scale=0.001):
    dissipation_time = sigma_t ** 2 / 2.0
    freqs = jnp.pi * jnp.linspace(0.0, img_dim - 1, img_dim, dtype=jnp.float32) / img_dim
    lam = freqs[:, None] ** 2 + freqs[None, :] ** 2              # (N, N)
    return jnp.exp(-lam * dissipation_time) * (1.0 - min_scale) + min_scale


def get_noise_scaling_cosine(t, logsnr_min=-10.0, logsnr_max=10.0):
    limit_max = jnp.arctan(jnp.exp(jnp.float32(-0.5 * logsnr_max)))
    limit_min = jnp.arctan(jnp.exp(jnp.float32(-0.5 * logsnr_min))) - limit_max
    logsnr = -2.0 * jnp.log(jnp.tan(limit_min * t + limit_max))
    return jnp.sqrt(jax.nn.sigmoid(logsnr)), jnp.sqrt(jax.nn.sigmoid(-logsnr))


def spectral_operator(n):
    """(n*n, n*n) symmetric K with vec_row(Re(fft2(X, ortho))) = vec_row(X) @ K.

    Re(fft2(X)) = Cm X Cm^T - Sm X Sm^T,  Cm[k,m]=cos(2*pi*k*m/n)/sqrt(n),
    Sm[k,m]=sin(2*pi*k*m/n)/sqrt(n)  =>  K = kron(Cm,Cm) - kron(Sm,Sm) (symmetric).
    Re(ifft2(real input)) is the same map (cos is even), so diffuse is two
    multiplications by K with the elementwise alpha scaling in between.
    """
    k = jnp.arange(n, dtype=jnp.float32)
    ang = 2.0 * jnp.pi * jnp.outer(k, k) / n
    scale = 1.0 / math.sqrt(n)
    cm = jnp.cos(ang) * scale
    sm = jnp.sin(ang) * scale
    return jnp.kron(cm, cm) - jnp.kron(sm, sm)


def _pick_tile_b(B, C, Ch):
    """Whole batches per M-tile: one tile unless the folded slab gets large."""
    if B * C <= 512:
        return B
    for tb in range(B - 1, 0, -1):
        if B % tb == 0 and tb * C <= 512 and (tb * C) % 8 == 0 and (tb * Ch) % 8 == 0:
            return tb
    return B


# ----------------------------------------------------------------------------
# the single fused kernel: diffuse -> context_fn -> denoise_fn -> loss partials
# ----------------------------------------------------------------------------
def _fused_forward_kernel(
        x_ref, eps_ref, a_ref, s_ref, fs_ref, k_ref,
        wc_ref, bc_ref, w1_ref, w2_ref, bias1_ref, w3_ref, b3_ref,
        sse_ref, abs_ref):
    mxu = k_ref.dtype                       # f32, or bf16 (weights pre-cast on host)

    x = x_ref[...]                          # (tm, HW)  folded (batch*channel, HW) slab
    eps = eps_ref[...]                      # (tm, HW)

    # ---- in-kernel alpha/sigma schedule: per-row columns, VPU broadcast, all f32 ----
    alpha = jnp.maximum(a_ref[...] * fs_ref[...], 1e-6)         # (tm,1)*(1,HW) -> (tm,HW)
    sigma = jnp.maximum(s_ref[...], 1e-6)                       # (tm,1)

    # ---- diffuse: z = ifft2(alpha * fft2(x).real).real + sigma*eps (2 MXU matmuls) ----
    kmat = k_ref[...]                                            # (HW, HW)
    u = jnp.dot(x.astype(mxu), kmat, preferred_element_type=jnp.float32)
    v = alpha * u
    z = jnp.dot(v.astype(mxu), kmat, preferred_element_type=jnp.float32) + sigma * eps

    # ---- context_fn: 1x1 conv as one block-diagonal channel matmul + bpp partial ----
    ctx = (jnp.dot(wc_ref[...], x.astype(wc_ref.dtype),
                   preferred_element_type=jnp.float32) + bc_ref[...])   # (tB*Cc, HW)
    abs_partial = jnp.sum(jnp.abs(ctx))

    # ---- denoise_fn: 2-layer MLP; time-emb + b1 + b2 pre-folded into bias1 column ----
    h = (jnp.dot(w1_ref[...], z.astype(w1_ref.dtype),
                 preferred_element_type=jnp.float32)
         + jnp.dot(w2_ref[...], ctx.astype(w2_ref.dtype),
                   preferred_element_type=jnp.float32)
         + bias1_ref[...])                                       # (tB*Ch, HW)
    h = jnp.maximum(h, 0.0)
    fx = (jnp.dot(w3_ref[...], h.astype(w3_ref.dtype),
                  preferred_element_type=jnp.float32) + b3_ref[...])    # (tm, HW)

    # ---- global/tile loss partials (only data leaving the kernel) ----
    d = eps - fx
    sse_ref[...] = jnp.full(sse_ref.shape, jnp.sum(d * d), jnp.float32)
    abs_ref[...] = jnp.full(abs_ref.shape, abs_partial, jnp.float32)


def fused_forward_pallas(x_all, eps_all, a_col, s_col, fs_row, kmat,
                         wc_bd, bc_col, w1_bd, w2_bd, bias1_col, w3_bd, b3_col):
    BC, HW = x_all.shape
    tm = wc_bd.shape[1]                     # tile rows = tile_b * C
    tcc = wc_bd.shape[0]                    # tile_b * Cc
    tch = w1_bd.shape[0]                    # tile_b * Ch
    assert BC % tm == 0
    n_tiles = BC // tm

    row_tile = lambda i: (i, 0)
    const = lambda i: (0, 0)
    out_tile = lambda i: (i, 0, 0)

    # explicit VMEM budget from the (double-buffered) block footprint (review #4)
    block_list = [
        (x_all, (tm, HW)), (eps_all, (tm, HW)),
        (a_col, (tm, 1)), (s_col, (tm, 1)),
        (fs_row, (1, HW)), (kmat, (HW, HW)),
        (wc_bd, wc_bd.shape), (bc_col, bc_col.shape),
        (w1_bd, w1_bd.shape), (w2_bd, w2_bd.shape),
        (bias1_col, (tch, 1)),
        (w3_bd, w3_bd.shape), (b3_col, b3_col.shape),
    ]
    blk_bytes = sum(2 * math.prod(s) * a.dtype.itemsize for a, s in block_list)
    blk_bytes += 2 * 2 * 8 * 128 * 4                                   # the two outputs
    vmem_limit = int(min(100 << 20, max(16 << 20, 2 * blk_bytes + (4 << 20))))

    return pl.pallas_call(
        _fused_forward_kernel,
        out_shape=(jax.ShapeDtypeStruct((n_tiles, 8, 128), jnp.float32),  # sse partials
                   jax.ShapeDtypeStruct((n_tiles, 8, 128), jnp.float32)), # |ctx| partials
        grid=(n_tiles,),
        in_specs=[
            pl.BlockSpec((tm, HW), row_tile),     # x slab (B*C folded into M)
            pl.BlockSpec((tm, HW), row_tile),     # eps slab
            pl.BlockSpec((tm, 1), row_tile),      # a_t per row
            pl.BlockSpec((tm, 1), row_tile),      # sigma_t per row
            pl.BlockSpec((1, HW), const),         # frequency scaling (shared)
            pl.BlockSpec((HW, HW), const),        # spectral operator K (shared)
            pl.BlockSpec((tcc, tm), const),       # w_ctx  (block-diagonal per tile)
            pl.BlockSpec((tcc, 1), const),        # b_ctx
            pl.BlockSpec((tch, tm), const),       # w1
            pl.BlockSpec((tch, tcc), const),      # w2
            pl.BlockSpec((tch, 1), row_tile),     # time-emb + b1 + b2 column (t-dep)
            pl.BlockSpec((tm, tch), const),       # w3
            pl.BlockSpec((tm, 1), const),         # b3
        ],
        out_specs=[pl.BlockSpec((1, 8, 128), out_tile),
                   pl.BlockSpec((1, 8, 128), out_tile)],
        compiler_params=pltpu.CompilerParams(
            dimension_semantics=("parallel",),    # M-tiles are independent
            vmem_limit_bytes=vmem_limit),
    )(x_all, eps_all, a_col, s_col, fs_row, kmat,
      wc_bd, bc_col, w1_bd, w2_bd, bias1_col, w3_bd, b3_col)


# ----------------------------------------------------------------------------
# GaussianDiffusion.forward  (loss_type='l2', aux_loss_weight=0, vbr=False)
# ----------------------------------------------------------------------------
def gaussian_diffusion_forward(params, x_start, key, mxu_dtype=jnp.float32):
    B, C, H, W = x_start.shape
    assert H == W, "square images assumed (reference uses img_dim = x.shape[-1])"
    # TODO(synk): beyond ~32x32 switch to separable per-axis DFT matmuls (v7x VMEM).
    assert W <= 32, "kron (HW,HW) spectral operator path is for small images only"
    HW = H * W
    Cc = params["w_ctx"].shape[0]
    Ch = params["w1"].shape[0]

    key_t, key_eps = jax.random.split(key)
    t = jax.random.uniform(key_t, (B,), dtype=jnp.float32)           # torch.rand(B)
    eps = jax.random.normal(key_eps, x_start.shape, dtype=jnp.float32)

    a_t, sig_t = get_noise_scaling_cosine(t)                          # (B,), (B,)
    fs_row = get_frequency_scaling(W).reshape(1, HW)                  # (1, HW)
    kmat = spectral_operator(W).astype(mxu_dtype)                     # (HW, HW)

    tile_b = _pick_tile_b(B, C, Ch)

    # fold batch * channels into the matmul M dimension (review #1)
    x_all = x_start.reshape(B * C, HW)
    eps_all = eps.reshape(B * C, HW)
    a_col = jnp.repeat(a_t, C).reshape(B * C, 1)
    s_col = jnp.repeat(sig_t, C).reshape(B * C, 1)

    # per-tile block-diagonal channel-mixing weights (identical for every tile)
    eye = jnp.eye(tile_b, dtype=jnp.float32)
    bd = lambda w: jnp.kron(eye, w).astype(mxu_dtype)                 # MXU operands
    col = lambda b: jnp.tile(b.reshape(-1, 1), (tile_b, 1))           # f32 bias columns
    wc_bd, bc_col = bd(params["w_ctx"]), col(params["b_ctx"])
    w1_bd, w2_bd = bd(params["w1"]), bd(params["w2"])
    w3_bd, b3_col = bd(params["w3"]), col(params["b3"])
    # time embedding of the synthetic denoise_fn (O(B*Ch) scalars) folded with b1+b2
    # into a single bias column -> the MLP first layer is 2 dots + 1 add in-kernel.
    tfeat = params["w_t"].reshape(1, Ch) * t[:, None] + params["b_t"].reshape(1, Ch)
    bias1_col = (tfeat + params["b1"].reshape(1, Ch)
                 + params["b2"].reshape(1, Ch)).reshape(B * Ch, 1)

    sse_parts, abs_parts = fused_forward_pallas(
        x_all, eps_all, a_col, s_col, fs_row, kmat,
        wc_bd, bc_col, w1_bd, w2_bd, bias1_col, w3_bd, b3_col)

    err = jnp.sum(sse_parts[:, 0, 0]) / (B * C * HW)        # F.mse_loss(eps, fx)
    bpp_mean = jnp.sum(abs_parts[:, 0, 0]) / (B * Cc * HW)  # mean_b of synthetic bpp
    loss = LAGRANGIAN_BETA * bpp_mean + err
    extra = None                                            # context_fn has no get_extra_loss
    return loss, extra


# ----------------------------------------------------------------------------
# pure-jnp reference (fft2/ifft2 based, mirrors the PyTorch module) for checking
# ----------------------------------------------------------------------------
def reference_forward(params, x_start, key):
    B, C, H, W = x_start.shape
    key_t, key_eps = jax.random.split(key)
    t = jax.random.uniform(key_t, (B,), dtype=jnp.float32)
    eps = jax.random.normal(key_eps, x_start.shape, dtype=jnp.float32)

    a_t, sig_t = get_noise_scaling_cosine(t)
    fs = get_frequency_scaling(W)                                      # (W, W)
    alpha = jnp.maximum(a_t[:, None, None, None] * fs[None, None], 1e-6)
    sigma = jnp.maximum(sig_t, 1e-6)[:, None, None, None]
    x_freq = jnp.fft.fft2(x_start, norm="ortho")                       # "dct_2d"
    z = jnp.fft.ifft2(alpha * x_freq.real, norm="ortho").real + sigma * eps

    ctx = (jnp.einsum("oc,bchw->bohw", params["w_ctx"], x_start)
           + params["b_ctx"][None, :, None, None])
    bpp = jnp.abs(ctx).reshape(B, -1).mean(axis=1)

    tfeat = params["w_t"].reshape(1, -1) * t[:, None] + params["b_t"].reshape(1, -1)
    h = (jnp.einsum("oc,bchw->bohw", params["w1"], z) + params["b1"][None, :, None, None]
         + jnp.einsum("oc,bchw->bohw", params["w2"], ctx) + params["b2"][None, :, None, None]
         + tfeat[:, :, None, None])
    h = jnp.maximum(h, 0.0)
    fx = jnp.einsum("oc,bchw->bohw", params["w3"], h) + params["b3"][None, :, None, None]

    err = jnp.mean((eps - fx) ** 2)
    return LAGRANGIAN_BETA * jnp.mean(bpp) + err


# ----------------------------------------------------------------------------
# synthetic context_fn / denoise_fn parameters (external nn.Modules in the ref)
# ----------------------------------------------------------------------------
def init_params(key, channels=4, ctx_channels=8, hidden=16):
    ks = jax.random.split(key, 8)
    return {
        "w_ctx": 0.1 * jax.random.normal(ks[0], (ctx_channels, channels), jnp.float32),
        "b_ctx": 0.01 * jax.random.normal(ks[1], (ctx_channels,), jnp.float32),
        "w1": 0.1 * jax.random.normal(ks[2], (hidden, channels), jnp.float32),
        "b1": 0.01 * jax.random.normal(ks[3], (hidden,), jnp.float32),
        "w2": 0.1 * jax.random.normal(ks[4], (hidden, ctx_channels), jnp.float32),
        "b2": 0.01 * jax.random.normal(ks[5], (hidden,), jnp.float32),
        "w3": 0.1 * jax.random.normal(ks[6], (channels, hidden), jnp.float32),
        "b3": jnp.zeros((channels,), jnp.float32),
        "w_t": 0.1 * jax.random.normal(ks[7], (hidden, 1), jnp.float32),
        "b_t": jnp.zeros((hidden,), jnp.float32),
    }


if __name__ == "__main__":
    key = jax.random.PRNGKey(0)
    k_param, k_data, k_fwd = jax.random.split(key, 3)

    B, C, H, W = 2, 4, 16, 16
    x_start = jax.random.normal(k_data, (B, C, H, W), dtype=jnp.float32)
    params = init_params(k_param, channels=C, ctx_channels=8, hidden=16)

    fwd = jax.jit(gaussian_diffusion_forward, static_argnames=("mxu_dtype",))

    # f32 MXU operands (reference numerics).
    loss, extra = fwd(params, x_start, k_fwd)
    jax.block_until_ready(loss)
    assert loss.shape == () and bool(jnp.isfinite(loss))

    # check against the pure-jnp fft2/ifft2 reference (same key -> same t/eps draws)
    loss_ref = jax.jit(reference_forward)(params, x_start, k_fwd)
    jax.block_until_ready(loss_ref)
    assert bool(jnp.allclose(loss, loss_ref, rtol=1e-2, atol=1e-2)), (loss, loss_ref)

    # bf16 MXU-operand path: beneficial on v5e as well as v6e/v7x (MXU is bf16-native);
    # all VPU elementwise math, biases, eps and accumulation stay f32.
    loss_bf16, _ = fwd(params, x_start, k_fwd, mxu_dtype=jnp.bfloat16)
    jax.block_until_ready(loss_bf16)
    assert bool(jnp.isfinite(loss_bf16))

    print("KERNEL_OK")
</pallas_src>

<mosaic_0001>
module attributes {stable_mosaic.version = 11 : i64} {
  func.func @_fused_forward_kernel(%arg0: i32, %arg1: memref<8x256xf32, #tpu.memory_space<vmem>>, %arg2: memref<8x256xf32, #tpu.memory_space<vmem>>, %arg3: memref<8x1xf32, #tpu.memory_space<vmem>>, %arg4: memref<8x1xf32, #tpu.memory_space<vmem>>, %arg5: memref<1x256xf32, #tpu.memory_space<vmem>>, %arg6: memref<256x256xf32, #tpu.memory_space<vmem>>, %arg7: memref<16x8xf32, #tpu.memory_space<vmem>>, %arg8: memref<16x1xf32, #tpu.memory_space<vmem>>, %arg9: memref<32x8xf32, #tpu.memory_space<vmem>>, %arg10: memref<32x16xf32, #tpu.memory_space<vmem>>, %arg11: memref<32x1xf32, #tpu.memory_space<vmem>>, %arg12: memref<8x32xf32, #tpu.memory_space<vmem>>, %arg13: memref<8x1xf32, #tpu.memory_space<vmem>>, %arg14: memref<1x8x128xf32, #tpu.memory_space<vmem>>, %arg15: memref<1x8x128xf32, #tpu.memory_space<vmem>>) attributes {dimension_semantics = [#tpu.dimension_semantics<parallel>], iteration_bounds = array<i64: 1>, scalar_prefetch = 0 : i64, scratch_operands = 0 : i64, tpu.core_type = #tpu.core_type<tc>, window_params = [{transform_indices = @transform_0, window_bounds = array<i64: 8, 256>}, {transform_indices = @transform_1, window_bounds = array<i64: 8, 256>}, {transform_indices = @transform_2, window_bounds = array<i64: 8, 1>}, {transform_indices = @transform_3, window_bounds = array<i64: 8, 1>}, {pipeline_mode = #tpu.pipeline_mode<synchronous>, transform_indices = @transform_4, window_bounds = array<i64: 1, 256>}, {pipeline_mode = #tpu.pipeline_mode<synchronous>, transform_indices = @transform_5, window_bounds = array<i64: 256, 256>}, {pipeline_mode = #tpu.pipeline_mode<synchronous>, transform_indices = @transform_6, window_bounds = array<i64: 16, 8>}, {pipeline_mode = #tpu.pipeline_mode<synchronous>, transform_indices = @transform_7, window_bounds = array<i64: 16, 1>}, {pipeline_mode = #tpu.pipeline_mode<synchronous>, transform_indices = @transform_8, window_bounds = array<i64: 32, 8>}, {pipeline_mode = #tpu.pipeline_mode<synchronous>, transform_indices = @transform_9, window_bounds = array<i64: 32, 16>}, {transform_indices = @transform_10, window_bounds = array<i64: 32, 1>}, {pipeline_mode = #tpu.pipeline_mode<synchronous>, transform_indices = @transform_11, window_bounds = array<i64: 8, 32>}, {pipeline_mode = #tpu.pipeline_mode<synchronous>, transform_indices = @transform_12, window_bounds = array<i64: 8, 1>}, {transform_indices = @transform_13, window_bounds = array<i64: 1, 8, 128>}, {transform_indices = @transform_14, window_bounds = array<i64: 1, 8, 128>}]} {
    %c0 = arith.constant 0 : index
    %c0_0 = arith.constant 0 : index
    %0 = vector.load %arg1[%c0, %c0_0] : memref<8x256xf32, #tpu.memory_space<vmem>>, vector<8x256xf32>
    %c0_1 = arith.constant 0 : index
    %c0_2 = arith.constant 0 : index
    %1 = vector.load %arg2[%c0_1, %c0_2] : memref<8x256xf32, #tpu.memory_space<vmem>>, vector<8x256xf32>
    %c0_3 = arith.constant 0 : index
    %c0_4 = arith.constant 0 : index
    %2 = vector.load %arg3[%c0_3, %c0_4] : memref<8x1xf32, #tpu.memory_space<vmem>>, vector<8x1xf32>
    %c0_5 = arith.constant 0 : index
    %c0_6 = arith.constant 0 : index
    %3 = vector.load %arg5[%c0_5, %c0_6] : memref<1x256xf32, #tpu.memory_space<vmem>>, vector<1x256xf32>
    %4 = vector.broadcast %2 : vector<8x1xf32> to vector<8x256xf32>
    %5 = vector.broadcast %3 : vector<1x256xf32> to vector<8x256xf32>
    %6 = arith.mulf %4, %5 : vector<8x256xf32>
    %cst = arith.constant 9.99999997E-7 : f32
    %7 = vector.broadcast %cst : f32 to vector<8x256xf32>
    %8 = arith.maximumf %6, %7 : vector<8x256xf32>
    %c0_7 = arith.constant 0 : index
    %c0_8 = arith.constant 0 : index
    %9 = vector.load %arg4[%c0_7, %c0_8] : memref<8x1xf32, #tpu.memory_space<vmem>>, vector<8x1xf32>
    %cst_9 = arith.constant 9.99999997E-7 : f32
    %10 = vector.broadcast %cst_9 : f32 to vector<8x1xf32>
    %11 = arith.maximumf %9, %10 : vector<8x1xf32>
    %c0_10 = arith.constant 0 : index
    %c0_11 = arith.constant 0 : index
    %12 = vector.load %arg6[%c0_10, %c0_11] : memref<256x256xf32, #tpu.memory_space<vmem>>, vector<256x256xf32>
    %cst_12 = arith.constant dense<0.000000e+00> : vector<8x256xf32>
    %13 = tpu.matmul %0, %12, %cst_12 {dimension_numbers = #tpu.dot_dimension_numbers<[1], [0], [0], [1], [0, 0, 1, 1], [], []>} : vector<8x256xf32>, vector<256x256xf32>, vector<8x256xf32> -> vector<8x256xf32>
    %14 = arith.mulf %8, %13 : vector<8x256xf32>
    %cst_13 = arith.constant dense<0.000000e+00> : vector<8x256xf32>
    %15 = tpu.matmul %14, %12, %cst_13 {dimension_numbers = #tpu.dot_dimension_numbers<[1], [0], [0], [1], [0, 0, 1, 1], [], []>} : vector<8x256xf32>, vector<256x256xf32>, vector<8x256xf32> -> vector<8x256xf32>
    %16 = vector.broadcast %11 : vector<8x1xf32> to vector<8x256xf32>
    %17 = arith.mulf %16, %1 : vector<8x256xf32>
    %18 = arith.addf %15, %17 : vector<8x256xf32>
    %c0_14 = arith.constant 0 : index
    %c0_15 = arith.constant 0 : index
    %19 = vector.load %arg7[%c0_14, %c0_15] : memref<16x8xf32, #tpu.memory_space<vmem>>, vector<16x8xf32>
    %cst_16 = arith.constant dense<0.000000e+00> : vector<16x256xf32>
    %20 = tpu.matmul %19, %0, %cst_16 {dimension_numbers = #tpu.dot_dimension_numbers<[1], [0], [0], [1], [0, 0, 1, 1], [], []>} : vector<16x8xf32>, vector<8x256xf32>, vector<16x256xf32> -> vector<16x256xf32>
    %c0_17 = arith.constant 0 : index
    %c0_18 = arith.constant 0 : index
    %21 = vector.load %arg8[%c0_17, %c0_18] : memref<16x1xf32, #tpu.memory_space<vmem>>, vector<16x1xf32>
    %22 = vector.broadcast %21 : vector<16x1xf32> to vector<16x256xf32>
    %23 = arith.addf %20, %22 : vector<16x256xf32>
    %24 = math.absf %23 : vector<16x256xf32>
    %25 = vector.shape_cast %24 : vector<16x256xf32> to vector<1x16x256xf32>
    %cst_19 = arith.constant dense<0.000000e+00> : vector<1xf32>
    %26 = vector.multi_reduction <add>, %25, %cst_19 [1, 2] : vector<1x16x256xf32> to vector<1xf32>
    %27 = vector.shape_cast %26 : vector<1xf32> to vector<1x1x1xf32>
    %28 = vector.extract %27[0, 0, 0] : f32 from vector<1x1x1xf32>
    %c0_20 = arith.constant 0 : index
    %c0_21 = arith.constant 0 : index
    %29 = vector.load %arg9[%c0_20, %c0_21] : memref<32x8xf32, #tpu.memory_space<vmem>>, vector<32x8xf32>
    %cst_22 = arith.constant dense<0.000000e+00> : vector<32x256xf32>
    %30 = tpu.matmul %29, %18, %cst_22 {dimension_numbers = #tpu.dot_dimension_numbers<[1], [0], [0], [1], [0, 0, 1, 1], [], []>} : vector<32x8xf32>, vector<8x256xf32>, vector<32x256xf32> -> vector<32x256xf32>
    %c0_23 = arith.constant 0 : index
    %c0_24 = arith.constant 0 : index
    %31 = vector.load %arg10[%c0_23, %c0_24] : memref<32x16xf32, #tpu.memory_space<vmem>>, vector<32x16xf32>
    %cst_25 = arith.constant dense<0.000000e+00> : vector<32x256xf32>
    %32 = tpu.matmul %31, %23, %cst_25 {dimension_numbers = #tpu.dot_dimension_numbers<[1], [0], [0], [1], [0, 0, 1, 1], [], []>} : vector<32x16xf32>, vector<16x256xf32>, vector<32x256xf32> -> vector<32x256xf32>
    %33 = arith.addf %30, %32 : vector<32x256xf32>
    %c0_26 = arith.constant 0 : index
    %c0_27 = arith.constant 0 : index
    %34 = vector.load %arg11[%c0_26, %c0_27] : memref<32x1xf32, #tpu.memory_space<vmem>>, vector<32x1xf32>
    %35 = vector.broadcast %34 : vector<32x1xf32> to vector<32x256xf32>
    %36 = arith.addf %33, %35 : vector<32x256xf32>
    %cst_28 = arith.constant 0.000000e+00 : f32
    %37 = vector.broadcast %cst_28 : f32 to vector<32x256xf32>
    %38 = arith.maximumf %36, %37 : vector<32x256xf32>
    %c0_29 = arith.constant 0 : index
    %c0_30 = arith.constant 0 : index
    %39 = vector.load %arg12[%c0_29, %c0_30] : memref<8x32xf32, #tpu.memory_space<vmem>>, vector<8x32xf32>
    %cst_31 = arith.constant dense<0.000000e+00> : vector<8x256xf32>
    %40 = tpu.matmul %39, %38, %cst_31 {dimension_numbers = #tpu.dot_dimension_numbers<[1], [0], [0], [1], [0, 0, 1, 1], [], []>} : vector<8x32xf32>, vector<32x256xf32>, vector<8x256xf32> -> vector<8x256xf32>
    %c0_32 = arith.constant 0 : index
    %c0_33 = arith.constant 0 : index
    %41 = vector.load %arg13[%c0_32, %c0_33] : memref<8x1xf32, #tpu.memory_space<vmem>>, vector<8x1xf32>
    %42 = vector.broadcast %41 : vector<8x1xf32> to vector<8x256xf32>
    %43 = arith.addf %40, %42 : vector<8x256xf32>
    %44 = arith.subf %1, %43 : vector<8x256xf32>
    %45 = arith.mulf %44, %44 : vector<8x256xf32>
    %46 = vector.shape_cast %45 : vector<8x256xf32> to vector<1x8x256xf32>
    %cst_34 = arith.constant dense<0.000000e+00> : vector<1xf32>
    %47 = vector.multi_reduction <add>, %46, %cst_34 [1, 2] : vector<1x8x256xf32> to vector<1xf32>
    %48 = vector.shape_cast %47 : vector<1xf32> to vector<1x1x1xf32>
    %49 = vector.extract %48[0, 0, 0] : f32 from vector<1x1x1xf32>
    %50 = vector.broadcast %49 : f32 to vector<1x8x128xf32>
    %c0_35 = arith.constant 0 : index
    %c0_36 = arith.constant 0 : index
    %c0_37 = arith.constant 0 : index
    %51 = vector.load %arg14[%c0_35, %c0_36, %c0_37] : memref<1x8x128xf32, #tpu.memory_space<vmem>>, vector<1x8x128xf32>
    tpu.vector_store %arg14[%c0_35, %c0_36, %c0_37], %50 {strides = array<i32>} : memref<1x8x128xf32, #tpu.memory_space<vmem>>, vector<1x8x128xf32>,
    %52 = vector.broadcast %28 : f32 to vector<1x8x128xf32>
    %c0_38 = arith.constant 0 : index
    %c0_39 = arith.constant 0 : index
    %c0_40 = arith.constant 0 : index
    %53 = vector.load %arg15[%c0_38, %c0_39, %c0_40] : memref<1x8x128xf32, #tpu.memory_space<vmem>>, vector<1x8x128xf32>
    tpu.vector_store %arg15[%c0_38, %c0_39, %c0_40], %52 {strides = array<i32>} : memref<1x8x128xf32, #tpu.memory_space<vmem>>, vector<1x8x128xf32>,
    return
  }
  func.func @transform_0(%arg0: i32) -> (i32, i32) {
    %c0_i32 = arith.constant 0 : i32
    %c0_i32_0 = arith.constant 0 : i32
    return %arg0, %c0_i32 : i32, i32
  }
  func.func @transform_1(%arg0: i32) -> (i32, i32) {
    %c0_i32 = arith.constant 0 : i32
    %c0_i32_0 = arith.constant 0 : i32
    return %arg0, %c0_i32 : i32, i32
  }
  func.func @transform_2(%arg0: i32) -> (i32, i32) {
    %c0_i32 = arith.constant 0 : i32
    %c0_i32_0 = arith.constant 0 : i32
    return %arg0, %c0_i32 : i32, i32
  }
  func.func @transform_3(%arg0: i32) -> (i32, i32) {
    %c0_i32 = arith.constant 0 : i32
    %c0_i32_0 = arith.constant 0 : i32
    return %arg0, %c0_i32 : i32, i32
  }
  func.func @transform_4(%arg0: i32) -> (i32, i32) {
    %c0_i32 = arith.constant 0 : i32
    %c0_i32_0 = arith.constant 0 : i32
    %c0_i32_1 = arith.constant 0 : i32
    return %c0_i32, %c0_i32_0 : i32, i32
  }
  func.func @transform_5(%arg0: i32) -> (i32, i32) {
    %c0_i32 = arith.constant 0 : i32
    %c0_i32_0 = arith.constant 0 : i32
    %c0_i32_1 = arith.constant 0 : i32
    return %c0_i32, %c0_i32_0 : i32, i32
  }
  func.func @transform_6(%arg0: i32) -> (i32, i32) {
    %c0_i32 = arith.constant 0 : i32
    %c0_i32_0 = arith.constant 0 : i32
    %c0_i32_1 = arith.constant 0 : i32
    return %c0_i32, %c0_i32_0 : i32, i32
  }
  func.func @transform_7(%arg0: i32) -> (i32, i32) {
    %c0_i32 = arith.constant 0 : i32
    %c0_i32_0 = arith.constant 0 : i32
    %c0_i32_1 = arith.constant 0 : i32
    return %c0_i32, %c0_i32_0 : i32, i32
  }
  func.func @transform_8(%arg0: i32) -> (i32, i32) {
    %c0_i32 = arith.constant 0 : i32
    %c0_i32_0 = arith.constant 0 : i32
    %c0_i32_1 = arith.constant 0 : i32
    return %c0_i32, %c0_i32_0 : i32, i32
  }
  func.func @transform_9(%arg0: i32) -> (i32, i32) {
    %c0_i32 = arith.constant 0 : i32
    %c0_i32_0 = arith.constant 0 : i32
    %c0_i32_1 = arith.constant 0 : i32
    return %c0_i32, %c0_i32_0 : i32, i32
  }
  func.func @transform_10(%arg0: i32) -> (i32, i32) {
    %c0_i32 = arith.constant 0 : i32
    %c0_i32_0 = arith.constant 0 : i32
    return %arg0, %c0_i32 : i32, i32
  }
  func.func @transform_11(%arg0: i32) -> (i32, i32) {
    %c0_i32 = arith.constant 0 : i32
    %c0_i32_0 = arith.constant 0 : i32
    %c0_i32_1 = arith.constant 0 : i32
    return %c0_i32, %c0_i32_0 : i32, i32
  }
  func.func @transform_12(%arg0: i32) -> (i32, i32) {
    %c0_i32 = arith.constant 0 : i32
    %c0_i32_0 = arith.constant 0 : i32
    %c0_i32_1 = arith.constant 0 : i32
    return %c0_i32, %c0_i32_0 : i32, i32
  }
  func.func @transform_13(%arg0: i32) -> (i32, i32, i32) {
    %c0_i32 = arith.constant 0 : i32
    %c0_i32_0 = arith.constant 0 : i32
    %c0_i32_1 = arith.constant 0 : i32
    return %arg0, %c0_i32, %c0_i32_0 : i32, i32, i32
  }
  func.func @transform_14(%arg0: i32) -> (i32, i32, i32) {
    %c0_i32 = arith.constant 0 : i32
    %c0_i32_0 = arith.constant 0 : i32
    %c0_i32_1 = arith.constant 0 : i32
    return %arg0, %c0_i32, %c0_i32_0 : i32, i32, i32
  }
}

</mosaic_0001>

<llo_original>
// kernel: gaussian_diffusion_forward.11
$region0: #{gaussian_diffusion_forward.11}
  #allocation0 [shape = 'u32[]', space=smem, size = 0x4, offset = 0x4, fixed_abs, tag = 'smem constant byte address 0x4 - core index']
  #allocation1 [shape = 'u32[144,128]{1,0:T(1,128)}', space=vmem, size = 0x12000, scoped, tag = 'internal scratch']
  %s0 = inlined_call_operand.vmem [shape: f32[8,256], index: 0, kind: input, shape index: {}]
  %s1 = inlined_call_operand.vmem [shape: f32[8,256], index: 1, kind: input, shape index: {}]
  %s2 = inlined_call_operand.vmem [shape: f32[8,1], index: 2, kind: input, shape index: {}]
  %s3 = inlined_call_operand.vmem [shape: f32[8,1], index: 3, kind: input, shape index: {}]
  %s4 = inlined_call_operand.vmem [shape: f32[1,256], index: 4, kind: input, shape index: {}]
  %s5 = inlined_call_operand.vmem [shape: f32[256,256], index: 5, kind: input, shape index: {}]
  %s6 = inlined_call_operand.vmem [shape: f32[16,8], index: 6, kind: input, shape index: {}]
  %s7 = inlined_call_operand.vmem [shape: f32[16,1], index: 7, kind: input, shape index: {}]
  %s8 = inlined_call_operand.vmem [shape: f32[32,8], index: 8, kind: input, shape index: {}]
  %s9 = inlined_call_operand.vmem [shape: f32[32,16], index: 9, kind: input, shape index: {}]
  %s10 = inlined_call_operand.vmem [shape: f32[32,1], index: 10, kind: input, shape index: {}]
  %s11 = inlined_call_operand.vmem [shape: f32[8,32], index: 11, kind: input, shape index: {}]
  %s12 = inlined_call_operand.vmem [shape: f32[8,1], index: 12, kind: input, shape index: {}]
  %s13 = inlined_call_operand.vmem [shape: f32[1,8,128], index: 13, kind: output, shape index: {0}]
  %s14 = inlined_call_operand.vmem [shape: f32[1,8,128], index: 14, kind: output, shape index: {1}]
  %15 = xla_tuple %s13, %s14
  %s16 = sld [smem:[#allocation0]]
  $region70: #{gaussian_diffusion_forward.11} parent=0
    _
  %s18 = ssub.s32 1, %s16
  %s19 = scalar_select 0, %s18, %s16
  // Predicated region
  $region2: #{gaussian_diffusion_forward.11} parent=0 // pred_check
    _
  $region3: #{gaussian_diffusion_forward.11} parent=0 // pred_check_branch
    %21 = sbr.rel (0) target = $region5
  $region4: #{gaussian_diffusion_forward.11} parent=0 // pred_region
    _
  $region5: #{gaussian_diffusion_forward.11} parent=0 // pred_fallthru
    _
  // Predicated region
  $region6: #{gaussian_diffusion_forward.11} parent=0 // pred_check
    _
  $region7: #{gaussian_diffusion_forward.11} parent=0 // pred_check_branch
    %23 = sbr.rel (0) target = $region9
  $region8: #{gaussian_diffusion_forward.11} parent=0 // pred_region
    _
  $region9: #{gaussian_diffusion_forward.11} parent=0 // pred_fallthru
    _
  // Predicated region
  $region10: #{gaussian_diffusion_forward.11} parent=0 // pred_check
    _
  $region11: #{gaussian_diffusion_forward.11} parent=0 // pred_check_branch
    %25 = sbr.rel (0) target = $region13
  $region12: #{gaussian_diffusion_forward.11} parent=0 // pred_region
    _
  $region13: #{gaussian_diffusion_forward.11} parent=0 // pred_fallthru
    _
  // Predicated region
  $region14: #{gaussian_diffusion_forward.11} parent=0 // pred_check
    _
  $region15: #{gaussian_diffusion_forward.11} parent=0 // pred_check_branch
    %27 = sbr.rel (0) target = $region17
  $region16: #{gaussian_diffusion_forward.11} parent=0 // pred_region
    _
  $region17: #{gaussian_diffusion_forward.11} parent=0 // pred_fallthru
    _
  // Predicated region
  $region18: #{gaussian_diffusion_forward.11} parent=0 // pred_check
    _
  $region19: #{gaussian_diffusion_forward.11} parent=0 // pred_check_branch
    %29 = sbr.rel (0) target = $region21
  $region20: #{gaussian_diffusion_forward.11} parent=0 // pred_region
    _
  $region21: #{gaussian_diffusion_forward.11} parent=0 // pred_fallthru
    _
  // Predicated region
  $region22: #{gaussian_diffusion_forward.11} parent=0 // pred_check
    _
  $region23: #{gaussian_diffusion_forward.11} parent=0 // pred_check_branch
    %31 = sbr.rel (0) target = $region25
  $region24: #{gaussian_diffusion_forward.11} parent=0 // pred_region
    _
  $region25: #{gaussian_diffusion_forward.11} parent=0 // pred_fallthru
    _
  // Predicated region
  $region26: #{gaussian_diffusion_forward.11} parent=0 // pred_check
    _
  $region27: #{gaussian_diffusion_forward.11} parent=0 // pred_check_branch
    %33 = sbr.rel (0) target = $region29
  $region28: #{gaussian_diffusion_forward.11} parent=0 // pred_region
    _
  $region29: #{gaussian_diffusion_forward.11} parent=0 // pred_fallthru
    _
  // Predicated region
  $region30: #{gaussian_diffusion_forward.11} parent=0 // pred_check
    _
  $region31: #{gaussian_diffusion_forward.11} parent=0 // pred_check_branch
    %35 = sbr.rel (0) target = $region33
  $region32: #{gaussian_diffusion_forward.11} parent=0 // pred_region
    _
  $region33: #{gaussian_diffusion_forward.11} parent=0 // pred_fallthru
    _
  // Predicated region
  $region34: #{gaussian_diffusion_forward.11} parent=0 // pred_check
    _
  $region35: #{gaussian_diffusion_forward.11} parent=0 // pred_check_branch
    %37 = sbr.rel (0) target = $region37
  $region36: #{gaussian_diffusion_forward.11} parent=0 // pred_region
    _
  $region37: #{gaussian_diffusion_forward.11} parent=0 // pred_fallthru
    _
  // Predicated region
  $region38: #{gaussian_diffusion_forward.11} parent=0 // pred_check
    _
  $region39: #{gaussian_diffusion_forward.11} parent=0 // pred_check_branch
    %39 = sbr.rel (0) target = $region41
  $region40: #{gaussian_diffusion_forward.11} parent=0 // pred_region
    _
  $region41: #{gaussian_diffusion_forward.11} parent=0 // pred_fallthru
    _
  // Predicated region
  $region42: #{gaussian_diffusion_forward.11} parent=0 // pred_check
    _
  $region43: #{gaussian_diffusion_forward.11} parent=0 // pred_check_branch
    %41 = sbr.rel (0) target = $region45
  $region44: #{gaussian_diffusion_forward.11} parent=0 // pred_region
    _
  $region45: #{gaussian_diffusion_forward.11} parent=0 // pred_fallthru
    _
  // Predicated region
  $region46: #{gaussian_diffusion_forward.11} parent=0 // pred_check
    _
  $region47: #{gaussian_diffusion_forward.11} parent=0 // pred_check_branch
    %43 = sbr.rel (0) target = $region49
  $region48: #{gaussian_diffusion_forward.11} parent=0 // pred_region
    _
  $region49: #{gaussian_diffusion_forward.11} parent=0 // pred_fallthru
    _
  // Predicated region
  $region50: #{gaussian_diffusion_forward.11} parent=0 // pred_check
    _
  $region51: #{gaussian_diffusion_forward.11} parent=0 // pred_check_branch
    %45 = sbr.rel (0) target = $region53
  $region52: #{gaussian_diffusion_forward.11} parent=0 // pred_region
    _
  $region53: #{gaussian_diffusion_forward.11} parent=0 // pred_fallthru
    _
  %v46 = vld [vmem:[%s0] sm:$0xff]
  %v47 = vld [vmem:[%s0 + $0x8] sm:$0xff]
  %v48 = vld [vmem:[%s1] sm:$0xff]
  %v49 = vld [vmem:[%s1 + $0x8] sm:$0xff]
  %v50 = vld [vmem:[%s2] sm:$0xff]
  %v51 = vld [vmem:[%s4] sm:$0x3]
  %53 = vset.pattern.permute.xlu0 0
  %54 = vperm.xlu0 %53, %v50
  %v55 = vpop.permute.xlu0 %54
  %v58 = vlaneseq
  %v59 = vshrl.u32 %v58, 7
  %v60 = vsub.s32 0, %v59
  %v61 = vrot.slane %v51, %v60
  %v62 = vlaneseq
  %v63 = vshrl.u32 %v62, 7
  %v64 = vsub.s32 1, %v63
  %v65 = vrot.slane %v51, %v64
  %v68 = vmul.f32 %v55, %v61
  %v69 = vmul.f32 %v55, %v65
  %v70 = vmax.f32 %v68, 1e-06
  %v71 = vmax.f32 %v69, 1e-06
  %v72 = vld [vmem:[%s3] sm:$0xff]
  %v73 = vmax.f32 %v72, 1e-06
  %v74 = vld [vmem:[%s5] sm:$0xff]
  %v75 = vld [vmem:[%s5 + $0x8] sm:$0xff]
  %v76 = vld [vmem:[%s5 + $0x10] sm:$0xff]
  %v77 = vld [vmem:[%s5 + $0x18] sm:$0xff]
  %v78 = vld [vmem:[%s5 + $0x20] sm:$0xff]
  %v79 = vld [vmem:[%s5 + $0x28] sm:$0xff]
  %v80 = vld [vmem:[%s5 + $0x30] sm:$0xff]
  %v81 = vld [vmem:[%s5 + $0x38] sm:$0xff]
  %v82 = vld [vmem:[%s5 + $0x40] sm:$0xff]
  %v83 = vld [vmem:[%s5 + $0x48] sm:$0xff]
  %v84 = vld [vmem:[%s5 + $0x50] sm:$0xff]
  %v85 = vld [vmem:[%s5 + $0x58] sm:$0xff]
  %v86 = vld [vmem:[%s5 + $0x60] sm:$0xff]
  %v87 = vld [vmem:[%s5 + $0x68] sm:$0xff]
  %v88 = vld [vmem:[%s5 + $0x70] sm:$0xff]
  %v89 = vld [vmem:[%s5 + $0x78] sm:$0xff]
  %v90 = vld [vmem:[%s5 + $0x80] sm:$0xff]
  %v91 = vld [vmem:[%s5 + $0x88] sm:$0xff]
  %v92 = vld [vmem:[%s5 + $0x90] sm:$0xff]
  %v93 = vld [vmem:[%s5 + $0x98] sm:$0xff]
  %v94 = vld [vmem:[%s5 + $0xa0] sm:$0xff]
  %v95 = vld [vmem:[%s5 + $0xa8] sm:$0xff]
  %v96 = vld [vmem:[%s5 + $0xb0] sm:$0xff]
  %v97 = vld [vmem:[%s5 + $0xb8] sm:$0xff]
  %v98 = vld [vmem:[%s5 + $0xc0] sm:$0xff]
  %v99 = vld [vmem:[%s5 + $0xc8] sm:$0xff]
  %v100 = vld [vmem:[%s5 + $0xd0] sm:$0xff]
  %v101 = vld [vmem:[%s5 + $0xd8] sm:$0xff]
  %v102 = vld [vmem:[%s5 + $0xe0] sm:$0xff]
  %v103 = vld [vmem:[%s5 + $0xe8] sm:$0xff]
  %v104 = vld [vmem:[%s5 + $0xf0] sm:$0xff]
  %v105 = vld [vmem:[%s5 + $0xf8] sm:$0xff]
  %v106 = vld [vmem:[%s5 + $0x100] sm:$0xff]
  %v107 = vld [vmem:[%s5 + $0x108] sm:$0xff]
  %v108 = vld [vmem:[%s5 + $0x110] sm:$0xff]
  %v109 = vld [vmem:[%s5 + $0x118] sm:$0xff]
  %v110 = vld [vmem:[%s5 + $0x120] sm:$0xff]
  %v111 = vld [vmem:[%s5 + $0x128] sm:$0xff]
  %v112 = vld [vmem:[%s5 + $0x130] sm:$0xff]
  %v113 = vld [vmem:[%s5 + $0x138] sm:$0xff]
  %v114 = vld [vmem:[%s5 + $0x140] sm:$0xff]
  %v115 = vld [vmem:[%s5 + $0x148] sm:$0xff]
  %v116 = vld [vmem:[%s5 + $0x150] sm:$0xff]
  %v117 = vld [vmem:[%s5 + $0x158] sm:$0xff]
  %v118 = vld [vmem:[%s5 + $0x160] sm:$0xff]
  %v119 = vld [vmem:[%s5 + $0x168] sm:$0xff]
  %v120 = vld [vmem:[%s5 + $0x170] sm:$0xff]
  %v121 = vld [vmem:[%s5 + $0x178] sm:$0xff]
  %v122 = vld [vmem:[%s5 + $0x180] sm:$0xff]
  %v123 = vld [vmem:[%s5 + $0x188] sm:$0xff]
  %v124 = vld [vmem:[%s5 + $0x190] sm:$0xff]
  %v125 = vld [vmem:[%s5 + $0x198] sm:$0xff]
  %v126 = vld [vmem:[%s5 + $0x1a0] sm:$0xff]
  %v127 = vld [vmem:[%s5 + $0x1a8] sm:$0xff]
  %v128 = vld [vmem:[%s5 + $0x1b0] sm:$0xff]
  %v129 = vld [vmem:[%s5 + $0x1b8] sm:$0xff]
  %v130 = vld [vmem:[%s5 + $0x1c0] sm:$0xff]
  %v131 = vld [vmem:[%s5 + $0x1c8] sm:$0xff]
  %v132 = vld [vmem:[%s5 + $0x1d0] sm:$0xff]
  %v133 = vld [vmem:[%s5 + $0x1d8] sm:$0xff]
  %v134 = vld [vmem:[%s5 + $0x1e0] sm:$0xff]
  %v135 = vld [vmem:[%s5 + $0x1e8] sm:$0xff]
  %v136 = vld [vmem:[%s5 + $0x1f0] sm:$0xff]
  %v137 = vld [vmem:[%s5 + $0x1f8] sm:$0xff]
  %138 = vmatprep.subr.mxu0 %v75
  %139 = vmatpush1.msra.mxu0 %v74
  %140 = vmatprep.subr.mxu0 %v77
  %141 = vmatpush1.msra.mxu0 %v76
  %142 = vmatprep.subr.mxu0 %v79
  %143 = vmatpush1.msra.mxu0 %v78
  %144 = vmatprep.subr.mxu0 %v81
  %145 = vmatpush1.msra.mxu0 %v80
  %146 = vmatprep.subr.mxu0 %v83
  %147 = vmatpush1.msra.mxu0 %v82
  %148 = vmatprep.subr.mxu0 %v85
  %149 = vmatpush1.msra.mxu0 %v84
  %150 = vmatprep.subr.mxu0 %v87
  %151 = vmatpush1.msra.mxu0 %v86
  %152 = vmatprep.subr.mxu0 %v89
  %153 = vmatpush1.msra.mxu0 %v88
  %154 = vmatprep.subr.mxu0 %v91
  %155 = vmatpush1.msra.mxu0 %v90
  %156 = vmatprep.subr.mxu0 %v93
  %157 = vmatpush1.msra.mxu0 %v92
  %158 = vmatprep.subr.mxu0 %v95
  %159 = vmatpush1.msra.mxu0 %v94
  %160 = vmatprep.subr.mxu0 %v97
  %161 = vmatpush1.msra.mxu0 %v96
  %162 = vmatprep.subr.mxu0 %v99
  %163 = vmatpush1.msra.mxu0 %v98
  %164 = vmatprep.subr.mxu0 %v101
  %165 = vmatpush1.msra.mxu0 %v100
  %166 = vmatprep.subr.mxu0 %v103
  %167 = vmatpush1.msra.mxu0 %v102
  %168 = vmatprep.subr.mxu0 %v105
  %169 = vmatpush1.msra.mxu0 %v104
  %170 = vmatprep.subr.mxu0 %v107
  %171 = vmatpush1.msra.mxu0 %v106
  %172 = vmatprep.subr.mxu0 %v109
  %173 = vmatpush1.msra.mxu0 %v108
  %174 = vmatprep.subr.mxu0 %v111
  %175 = vmatpush1.msra.mxu0 %v110
  %176 = vmatprep.subr.mxu0 %v113
  %177 = vmatpush1.msra.mxu0 %v112
  %178 = vmatprep.subr.mxu0 %v115
  %179 = vmatpush1.msra.mxu0 %v114
  %180 = vmatprep.subr.mxu0 %v117
  %181 = vmatpush1.msra.mxu0 %v116
  %182 = vmatprep.subr.mxu0 %v119
  %183 = vmatpush1.msra.mxu0 %v118
  %184 = vmatprep.subr.mxu0 %v121
  %185 = vmatpush1.msra.mxu0 %v120
  %186 = vmatprep.subr.mxu0 %v123
  %187 = vmatpush1.msra.mxu0 %v122
  %188 = vmatprep.subr.mxu0 %v125
  %189 = vmatpush1.msra.mxu0 %v124
  %190 = vmatprep.subr.mxu0 %v127
  %191 = vmatpush1.msra.mxu0 %v126
  %192 = vmatprep.subr.mxu0 %v129
  %193 = vmatpush1.msra.mxu0 %v128
  %194 = vmatprep.subr.mxu0 %v131
  %195 = vmatpush1.msra.mxu0 %v130
  %196 = vmatprep.subr.mxu0 %v133
  %197 = vmatpush1.msra.mxu0 %v132
  %198 = vmatprep.subr.mxu0 %v135
  %199 = vmatpush1.msra.mxu0 %v134
  %200 = vmatprep.subr.mxu0 %v137
  %201 = vmatpush1.msra.mxu0 %v136
  %202 = vmatprep.mubr.f32.mxu0 %v47
  %203 = vmatmul.mubr.f32.gmra.mrb[0].mxu0 %v46
  %v204 = vpop.f32.mrb[0].mxu0
  %v205 = vadd.f32 0.0, %v204
  %v206 = vpop.f32.mrb[0].mxu0
  %v207 = vadd.f32 0.0, %v206
  %208 = vdwg.mxu0
  %v209 = vmul.f32 %v70, %v205
  %v210 = vmul.f32 %v71, %v207
  %212 = vset.pattern.permute.xlu0 0
  %213 = vperm.xlu0 %212, %v73
  %v214 = vpop.permute.xlu0 %213
  %v216 = vmul.f32 %v214, %v48
  %v217 = vmul.f32 %v214, %v49
  %218 = vmatprep.subr.mxu0 %v75
  %219 = vmatpush1.msra.mxu0 %v74
  %220 = vmatprep.subr.mxu0 %v77
  %221 = vmatpush1.msra.mxu0 %v76
  %222 = vmatprep.subr.mxu0 %v79
  %223 = vmatpush1.msra.mxu0 %v78
  %224 = vmatprep.subr.mxu0 %v81
  %225 = vmatpush1.msra.mxu0 %v80
  %226 = vmatprep.subr.mxu0 %v83
  %227 = vmatpush1.msra.mxu0 %v82
  %228 = vmatprep.subr.mxu0 %v85
  %229 = vmatpush1.msra.mxu0 %v84
  %230 = vmatprep.subr.mxu0 %v87
  %231 = vmatpush1.msra.mxu0 %v86
  %232 = vmatprep.subr.mxu0 %v89
  %233 = vmatpush1.msra.mxu0 %v88
  %234 = vmatprep.subr.mxu0 %v91
  %235 = vmatpush1.msra.mxu0 %v90
  %236 = vmatprep.subr.mxu0 %v93
  %237 = vmatpush1.msra.mxu0 %v92
  %238 = vmatprep.subr.mxu0 %v95
  %239 = vmatpush1.msra.mxu0 %v94
  %240 = vmatprep.subr.mxu0 %v97
  %241 = vmatpush1.msra.mxu0 %v96
  %242 = vmatprep.subr.mxu0 %v99
  %243 = vmatpush1.msra.mxu0 %v98
  %244 = vmatprep.subr.mxu0 %v101
  %245 = vmatpush1.msra.mxu0 %v100
  %246 = vmatprep.subr.mxu0 %v103
  %247 = vmatpush1.msra.mxu0 %v102
  %248 = vmatprep.subr.mxu0 %v105
  %249 = vmatpush1.msra.mxu0 %v104
  %250 = vmatprep.subr.mxu0 %v107
  %251 = vmatpush1.msra.mxu0 %v106
  %252 = vmatprep.subr.mxu0 %v109
  %253 = vmatpush1.msra.mxu0 %v108
  %254 = vmatprep.subr.mxu0 %v111
  %255 = vmatpush1.msra.mxu0 %v110
  %256 = vmatprep.subr.mxu0 %v113
  %257 = vmatpush1.msra.mxu0 %v112
  %258 = vmatprep.subr.mxu0 %v115
  %259 = vmatpush1.msra.mxu0 %v114
  %260 = vmatprep.subr.mxu0 %v117
  %261 = vmatpush1.msra.mxu0 %v116
  %262 = vmatprep.subr.mxu0 %v119
  %263 = vmatpush1.msra.mxu0 %v118
  %264 = vmatprep.subr.mxu0 %v121
  %265 = vmatpush1.msra.mxu0 %v120
  %266 = vmatprep.subr.mxu0 %v123
  %267 = vmatpush1.msra.mxu0 %v122
  %268 = vmatprep.subr.mxu0 %v125
  %269 = vmatpush1.msra.mxu0 %v124
  %270 = vmatprep.subr.mxu0 %v127
  %271 = vmatpush1.msra.mxu0 %v126
  %272 = vmatprep.subr.mxu0 %v129
  %273 = vmatpush1.msra.mxu0 %v128
  %274 = vmatprep.subr.mxu0 %v131
  %275 = vmatpush1.msra.mxu0 %v130
  %276 = vmatprep.subr.mxu0 %v133
  %277 = vmatpush1.msra.mxu0 %v132
  %278 = vmatprep.subr.mxu0 %v135
  %279 = vmatpush1.msra.mxu0 %v134
  %280 = vmatprep.subr.mxu0 %v137
  %281 = vmatpush1.msra.mxu0 %v136
  %282 = vmatprep.mubr.f32.mxu0 %v210
  %283 = vmatmul.mubr.f32.gmra.mrb[0].mxu0 %v209
  %v284 = vpop.f32.mrb[0].mxu0
  %v285 = vadd.f32 %v216, %v284
  %v286 = vpop.f32.mrb[0].mxu0
  %v287 = vadd.f32 %v217, %v286
  %288 = vdwg.mxu0
  %v289 = vld [vmem:[%s6] sm:$0xff]
  %v290 = vld [vmem:[%s6 + $0x8] sm:$0xff]
  %v291 = vld [vmem:[%s7] sm:$0xff]
  %v292 = vld [vmem:[%s7 + $0x8] sm:$0xff]
  %294 = vset.pattern.permute.xlu0 0
  %295 = vperm.xlu0 %294, %v291
  %v296 = vpop.permute.xlu0 %295
  %299 = vset.pattern.permute.xlu0 0
  %300 = vperm.xlu0 %299, %v292
  %v301 = vpop.permute.xlu0 %300
  %vm303 = vcmask 64512
  %v305 = vsel %vm303, %v289, 0
  %v308 = vsel %vm303, %v290, 0
  %310 = vmatprep.subr.mxu0 %v47
  %311 = vmatpush1.msra.mxu0 %v46
  %312 = vmatprep.subr.mxu0 0.0
  %313 = vmatpush1.msra.mxu0 0.0
  %314 = vmatprep.subr.mxu0 0.0
  %315 = vmatpush1.msra.mxu0 0.0
  %316 = vmatprep.subr.mxu0 0.0
  %317 = vmatpush1.msra.mxu0 0.0
  %318 = vmatprep.subr.mxu0 0.0
  %319 = vmatpush1.msra.mxu0 0.0
  %320 = vmatprep.subr.mxu0 0.0
  %321 = vmatpush1.msra.mxu0 0.0
  %322 = vmatprep.subr.mxu0 0.0
  %323 = vmatpush1.msra.mxu0 0.0
  %324 = vmatprep.subr.mxu0 0.0
  %325 = vmatpush1.msra.mxu0 0.0
  %326 = vmatprep.subr.mxu0 0.0
  %327 = vmatpush1.msra.mxu0 0.0
  %328 = vmatprep.subr.mxu0 0.0
  %329 = vmatpush1.msra.mxu0 0.0
  %330 = vmatprep.subr.mxu0 0.0
  %331 = vmatpush1.msra.mxu0 0.0
  %332 = vmatprep.subr.mxu0 0.0
  %333 = vmatpush1.msra.mxu0 0.0
  %334 = vmatprep.subr.mxu0 0.0
  %335 = vmatpush1.msra.mxu0 0.0
  %336 = vmatprep.subr.mxu0 0.0
  %337 = vmatpush1.msra.mxu0 0.0
  %338 = vmatprep.subr.mxu0 0.0
  %339 = vmatpush1.msra.mxu0 0.0
  %340 = vmatprep.subr.mxu0 0.0
  %341 = vmatpush1.msra.mxu0 0.0
  %342 = vmatprep.subr.mxu0 0.0
  %343 = vmatpush1.msra.mxu0 0.0
  %344 = vmatprep.subr.mxu0 0.0
  %345 = vmatpush1.msra.mxu0 0.0
  %346 = vmatprep.subr.mxu0 0.0
  %347 = vmatpush1.msra.mxu0 0.0
  %348 = vmatprep.subr.mxu0 0.0
  %349 = vmatpush1.msra.mxu0 0.0
  %350 = vmatprep.subr.mxu0 0.0
  %351 = vmatpush1.msra.mxu0 0.0
  %352 = vmatprep.subr.mxu0 0.0
  %353 = vmatpush1.msra.mxu0 0.0
  %354 = vmatprep.subr.mxu0 0.0
  %355 = vmatpush1.msra.mxu0 0.0
  %356 = vmatprep.subr.mxu0 0.0
  %357 = vmatpush1.msra.mxu0 0.0
  %358 = vmatprep.subr.mxu0 0.0
  %359 = vmatpush1.msra.mxu0 0.0
  %360 = vmatprep.subr.mxu0 0.0
  %361 = vmatpush1.msra.mxu0 0.0
  %362 = vmatprep.subr.mxu0 0.0
  %363 = vmatpush1.msra.mxu0 0.0
  %364 = vmatprep.subr.mxu0 0.0
  %365 = vmatpush1.msra.mxu0 0.0
  %366 = vmatprep.subr.mxu0 0.0
  %367 = vmatpush1.msra.mxu0 0.0
  %368 = vmatprep.subr.mxu0 0.0
  %369 = vmatpush1.msra.mxu0 0.0
  %370 = vmatprep.subr.mxu0 0.0
  %371 = vmatpush1.msra.mxu0 0.0
  %372 = vmatprep.subr.mxu0 0.0
  %373 = vmatpush1.msra.mxu0 0.0
  %374 = vmatprep.mubr.f32.mxu0 0.0
  %375 = vmatmul.mubr.f32.gmra.mrb[0].mxu0 %v305
  %v376 = vpop.f32.mrb[0].mxu0
  %v377 = vadd.f32 %v296, %v376
  %v378 = vpop.f32.mrb[0].mxu0
  %v379 = vadd.f32 %v296, %v378
  %380 = vmatprep.mubr.f32.mxu0 0.0
  %381 = vmatmul.mubr.f32.gmra.mrb[0].mxu0 %v308
  %v382 = vpop.f32.mrb[0].mxu0
  %v383 = vadd.f32 %v301, %v382
  %v384 = vpop.f32.mrb[0].mxu0
  %v385 = vadd.f32 %v301, %v384
  %386 = vdwg.mxu0
  %v387 = vand.u32 2147483647, %v377
  %v388 = vand.u32 2147483647, %v379
  %v389 = vand.u32 2147483647, %v383
  %v390 = vand.u32 2147483647, %v385
  %v391 = vadd.f32 %v387, %v388
  %v392 = vadd.f32 %v391, %v389
  %v393 = vadd.f32 %v392, %v390
  %394 = vadd.xlane.f32.xlu0 %v393
  %v395 = vpop.xlane.xlu0 %394
  %v396 = vrot.slane %v395, 4
  %v397 = vadd.f32 %v395, %v396
  %v398 = vrot.slane %v397, 2
  %v399 = vadd.f32 %v397, %v398
  %v400 = vrot.slane %v399, 1
  %v401 = vadd.f32 %v399, %v400
  %s402 = vtos %v401
  %v403 = vld [vmem:[%s8] sm:$0xff]
  %v404 = vld [vmem:[%s8 + $0x8] sm:$0xff]
  %v405 = vld [vmem:[%s8 + $0x10] sm:$0xff]
  %v406 = vld [vmem:[%s8 + $0x18] sm:$0xff]
  %v407 = vld [vmem:[%s9] sm:$0xff]
  %v408 = vld [vmem:[%s9 + $0x8] sm:$0xff]
  %v409 = vld [vmem:[%s9 + $0x10] sm:$0xff]
  %v410 = vld [vmem:[%s9 + $0x18] sm:$0xff]
  %vm411 = vcmask 130048
  %v413 = vsel %vm411, %v407, 0
  %v416 = vsel %vm411, %v408, 0
  %v419 = vsel %vm411, %v409, 0
  %v422 = vsel %vm411, %v410, 0
  %424 = vmatprep.subr.mxu0 %v379
  %425 = vmatpush1.msra.mxu0 %v377
  %426 = vmatprep.subr.mxu0 %v385
  %427 = vmatpush1.msra.mxu0 %v383
  %428 = vmatprep.subr.mxu0 0.0
  %429 = vmatpush1.msra.mxu0 0.0
  %430 = vmatprep.subr.mxu0 0.0
  %431 = vmatpush1.msra.mxu0 0.0
  %432 = vmatprep.subr.mxu0 0.0
  %433 = vmatpush1.msra.mxu0 0.0
  %434 = vmatprep.subr.mxu0 0.0
  %435 = vmatpush1.msra.mxu0 0.0
  %436 = vmatprep.subr.mxu0 0.0
  %437 = vmatpush1.msra.mxu0 0.0
  %438 = vmatprep.subr.mxu0 0.0
  %439 = vmatpush1.msra.mxu0 0.0
  %440 = vmatprep.subr.mxu0 0.0
  %441 = vmatpush1.msra.mxu0 0.0
  %442 = vmatprep.subr.mxu0 0.0
  %443 = vmatpush1.msra.mxu0 0.0
  %444 = vmatprep.subr.mxu0 0.0
  %445 = vmatpush1.msra.mxu0 0.0
  %446 = vmatprep.subr.mxu0 0.0
  %447 = vmatpush1.msra.mxu0 0.0
  %448 = vmatprep.subr.mxu0 0.0
  %449 = vmatpush1.msra.mxu0 0.0
  %450 = vmatprep.subr.mxu0 0.0
  %451 = vmatpush1.msra.mxu0 0.0
  %452 = vmatprep.subr.mxu0 0.0
  %453 = vmatpush1.msra.mxu0 0.0
  %454 = vmatprep.subr.mxu0 0.0
  %455 = vmatpush1.msra.mxu0 0.0
  %456 = vmatprep.subr.mxu0 0.0
  %457 = vmatpush1.msra.mxu0 0.0
  %458 = vmatprep.subr.mxu0 0.0
  %459 = vmatpush1.msra.mxu0 0.0
  %460 = vmatprep.subr.mxu0 0.0
  %461 = vmatpush1.msra.mxu0 0.0
  %462 = vmatprep.subr.mxu0 0.0
  %463 = vmatpush1.msra.mxu0 0.0
  %464 = vmatprep.subr.mxu0 0.0
  %465 = vmatpush1.msra.mxu0 0.0
  %466 = vmatprep.subr.mxu0 0.0
  %467 = vmatpush1.msra.mxu0 0.0
  %468 = vmatprep.subr.mxu0 0.0
  %469 = vmatpush1.msra.mxu0 0.0
  %470 = vmatprep.subr.mxu0 0.0
  %471 = vmatpush1.msra.mxu0 0.0
  %472 = vmatprep.subr.mxu0 0.0
  %473 = vmatpush1.msra.mxu0 0.0
  %474 = vmatprep.subr.mxu0 0.0
  %475 = vmatpush1.msra.mxu0 0.0
  %476 = vmatprep.subr.mxu0 0.0
  %477 = vmatpush1.msra.mxu0 0.0
  %478 = vmatprep.subr.mxu0 0.0
  %479 = vmatpush1.msra.mxu0 0.0
  %480 = vmatprep.subr.mxu0 0.0
  %481 = vmatpush1.msra.mxu0 0.0
  %482 = vmatprep.subr.mxu0 0.0
  %483 = vmatpush1.msra.mxu0 0.0
  %484 = vmatprep.subr.mxu0 0.0
  %485 = vmatpush1.msra.mxu0 0.0
  %486 = vmatprep.subr.mxu0 0.0
  %487 = vmatpush1.msra.mxu0 0.0
  %488 = vmatprep.mubr.f32.mxu0 0.0
  %489 = vmatmul.mubr.f32.gmra.mrb[0].mxu0 %v413
  %v490 = vpop.f32.mrb[0].mxu0
  %v491 = vadd.f32 0.0, %v490
  %v492 = vpop.f32.mrb[0].mxu0
  %v493 = vadd.f32 0.0, %v492
  %494 = vmatprep.mubr.f32.mxu0 0.0
  %495 = vmatmul.mubr.f32.gmra.mrb[0].mxu0 %v416
  %v496 = vpop.f32.mrb[0].mxu0
  %v497 = vadd.f32 0.0, %v496
  %v498 = vpop.f32.mrb[0].mxu0
  %v499 = vadd.f32 0.0, %v498
  %500 = vmatprep.mubr.f32.mxu0 0.0
  %501 = vmatmul.mubr.f32.gmra.mrb[0].mxu0 %v419
  %v502 = vpop.f32.mrb[0].mxu0
  %v503 = vadd.f32 0.0, %v502
  %v504 = vpop.f32.mrb[0].mxu0
  %v505 = vadd.f32 0.0, %v504
  %506 = vmatprep.mubr.f32.mxu0 0.0
  %507 = vmatmul.mubr.f32.gmra.mrb[0].mxu0 %v422
  %v508 = vpop.f32.mrb[0].mxu0
  %v509 = vadd.f32 0.0, %v508
  %v510 = vpop.f32.mrb[0].mxu0
  %v511 = vadd.f32 0.0, %v510
  %512 = vdwg.mxu0
  %v514 = vsel %vm303, %v403, 0
  %v517 = vsel %vm303, %v404, 0
  %v520 = vsel %vm303, %v405, 0
  %v523 = vsel %vm303, %v406, 0
  %525 = vmatprep.subr.mxu0 %v287
  %526 = vmatpush1.msra.mxu0 %v285
  %527 = vmatprep.subr.mxu0 0.0
  %528 = vmatpush1.msra.mxu0 0.0
  %529 = vmatprep.subr.mxu0 0.0
  %530 = vmatpush1.msra.mxu0 0.0
  %531 = vmatprep.subr.mxu0 0.0
  %532 = vmatpush1.msra.mxu0 0.0
  %533 = vmatprep.subr.mxu0 0.0
  %534 = vmatpush1.msra.mxu0 0.0
  %535 = vmatprep.subr.mxu0 0.0
  %536 = vmatpush1.msra.mxu0 0.0
  %537 = vmatprep.subr.mxu0 0.0
  %538 = vmatpush1.msra.mxu0 0.0
  %539 = vmatprep.subr.mxu0 0.0
  %540 = vmatpush1.msra.mxu0 0.0
  %541 = vmatprep.subr.mxu0 0.0
  %542 = vmatpush1.msra.mxu0 0.0
  %543 = vmatprep.subr.mxu0 0.0
  %544 = vmatpush1.msra.mxu0 0.0
  %545 = vmatprep.subr.mxu0 0.0
  %546 = vmatpush1.msra.mxu0 0.0
  %547 = vmatprep.subr.mxu0 0.0
  %548 = vmatpush1.msra.mxu0 0.0
  %549 = vmatprep.subr.mxu0 0.0
  %550 = vmatpush1.msra.mxu0 0.0
  %551 = vmatprep.subr.mxu0 0.0
  %552 = vmatpush1.msra.mxu0 0.0
  %553 = vmatprep.subr.mxu0 0.0
  %554 = vmatpush1.msra.mxu0 0.0
  %555 = vmatprep.subr.mxu0 0.0
  %556 = vmatpush1.msra.mxu0 0.0
  %557 = vmatprep.subr.mxu0 0.0
  %558 = vmatpush1.msra.mxu0 0.0
  %559 = vmatprep.subr.mxu0 0.0
  %560 = vmatpush1.msra.mxu0 0.0
  %561 = vmatprep.subr.mxu0 0.0
  %562 = vmatpush1.msra.mxu0 0.0
  %563 = vmatprep.subr.mxu0 0.0
  %564 = vmatpush1.msra.mxu0 0.0
  %565 = vmatprep.subr.mxu0 0.0
  %566 = vmatpush1.msra.mxu0 0.0
  %567 = vmatprep.subr.mxu0 0.0
  %568 = vmatpush1.msra.mxu0 0.0
  %569 = vmatprep.subr.mxu0 0.0
  %570 = vmatpush1.msra.mxu0 0.0
  %571 = vmatprep.subr.mxu0 0.0
  %572 = vmatpush1.msra.mxu0 0.0
  %573 = vmatprep.subr.mxu0 0.0
  %574 = vmatpush1.msra.mxu0 0.0
  %575 = vmatprep.subr.mxu0 0.0
  %576 = vmatpush1.msra.mxu0 0.0
  %577 = vmatprep.subr.mxu0 0.0
  %578 = vmatpush1.msra.mxu0 0.0
  %579 = vmatprep.subr.mxu0 0.0
  %580 = vmatpush1.msra.mxu0 0.0
  %581 = vmatprep.subr.mxu0 0.0
  %582 = vmatpush1.msra.mxu0 0.0
  %583 = vmatprep.subr.mxu0 0.0
  %584 = vmatpush1.msra.mxu0 0.0
  %585 = vmatprep.subr.mxu0 0.0
  %586 = vmatpush1.msra.mxu0 0.0
  %587 = vmatprep.subr.mxu0 0.0
  %588 = vmatpush1.msra.mxu0 0.0
  %589 = vmatprep.mubr.f32.mxu0 0.0
  %590 = vmatmul.mubr.f32.gmra.mrb[0].mxu0 %v514
  %v591 = vpop.f32.mrb[0].mxu0
  %v592 = vadd.f32 %v491, %v591
  %v593 = vpop.f32.mrb[0].mxu0
  %v594 = vadd.f32 %v493, %v593
  %595 = vmatprep.mubr.f32.mxu0 0.0
  %596 = vmatmul.mubr.f32.gmra.mrb[0].mxu0 %v517
  %v597 = vpop.f32.mrb[0].mxu0
  %v598 = vadd.f32 %v497, %v597
  %v599 = vpop.f32.mrb[0].mxu0
  %v600 = vadd.f32 %v499, %v599
  %601 = vmatprep.mubr.f32.mxu0 0.0
  %602 = vmatmul.mubr.f32.gmra.mrb[0].mxu0 %v520
  %v603 = vpop.f32.mrb[0].mxu0
  %v604 = vadd.f32 %v503, %v603
  %v605 = vpop.f32.mrb[0].mxu0
  %v606 = vadd.f32 %v505, %v605
  %607 = vmatprep.mubr.f32.mxu0 0.0
  %608 = vmatmul.mubr.f32.gmra.mrb[0].mxu0 %v523
  %v609 = vpop.f32.mrb[0].mxu0
  %v610 = vadd.f32 %v509, %v609
  %v611 = vpop.f32.mrb[0].mxu0
  %v612 = vadd.f32 %v511, %v611
  %613 = vdwg.mxu0
  %v614 = vld [vmem:[%s10] sm:$0xff]
  %v615 = vld [vmem:[%s10 + $0x8] sm:$0xff]
  %v616 = vld [vmem:[%s10 + $0x10] sm:$0xff]
  %v617 = vld [vmem:[%s10 + $0x18] sm:$0xff]
  %619 = vset.pattern.permute.xlu0 0
  %620 = vperm.xlu0 %619, %v614
  %v621 = vpop.permute.xlu0 %620
  %624 = vset.pattern.permute.xlu0 0
  %625 = vperm.xlu0 %624, %v615
  %v626 = vpop.permute.xlu0 %625
  %629 = vset.pattern.permute.xlu0 0
  %630 = vperm.xlu0 %629, %v616
  %v631 = vpop.permute.xlu0 %630
  %634 = vset.pattern.permute.xlu0 0
  %635 = vperm.xlu0 %634, %v617
  %v636 = vpop.permute.xlu0 %635
  %v638 = vadd.f32 %v592, %v621
  %v639 = vadd.f32 %v594, %v621
  %v640 = vadd.f32 %v598, %v626
  %v641 = vadd.f32 %v600, %v626
  %v642 = vadd.f32 %v604, %v631
  %v643 = vadd.f32 %v606, %v631
  %v644 = vadd.f32 %v610, %v636
  %v645 = vadd.f32 %v612, %v636
  %v646 = vmax.f32 %v638, 0.0
  %v647 = vmax.f32 %v639, 0.0
  %v648 = vmax.f32 %v640, 0.0
  %v649 = vmax.f32 %v641, 0.0
  %v650 = vmax.f32 %v642, 0.0
  %v651 = vmax.f32 %v643, 0.0
  %v652 = vmax.f32 %v644, 0.0
  %v653 = vmax.f32 %v645, 0.0
  %v654 = vld [vmem:[%s11] sm:$0xff]
  %v655 = vld [vmem:[%s12] sm:$0xff]
  %657 = vset.pattern.permute.xlu0 0
  %658 = vperm.xlu0 %657, %v655
  %v659 = vpop.permute.xlu0 %658
  %vm661 = vcmask 261120
  %v663 = vsel %vm661, %v654, 0
  %665 = vmatprep.subr.mxu0 %v647
  %666 = vmatpush1.msra.mxu0 %v646
  %667 = vmatprep.subr.mxu0 %v649
  %668 = vmatpush1.msra.mxu0 %v648
  %669 = vmatprep.subr.mxu0 %v651
  %670 = vmatpush1.msra.mxu0 %v650
  %671 = vmatprep.subr.mxu0 %v653
  %672 = vmatpush1.msra.mxu0 %v652
  %673 = vmatprep.subr.mxu0 0.0
  %674 = vmatpush1.msra.mxu0 0.0
  %675 = vmatprep.subr.mxu0 0.0
  %676 = vmatpush1.msra.mxu0 0.0
  %677 = vmatprep.subr.mxu0 0.0
  %678 = vmatpush1.msra.mxu0 0.0
  %679 = vmatprep.subr.mxu0 0.0
  %680 = vmatpush1.msra.mxu0 0.0
  %681 = vmatprep.subr.mxu0 0.0
  %682 = vmatpush1.msra.mxu0 0.0
  %683 = vmatprep.subr.mxu0 0.0
  %684 = vmatpush1.msra.mxu0 0.0
  %685 = vmatprep.subr.mxu0 0.0
  %686 = vmatpush1.msra.mxu0 0.0
  %687 = vmatprep.subr.mxu0 0.0
  %688 = vmatpush1.msra.mxu0 0.0
  %689 = vmatprep.subr.mxu0 0.0
  %690 = vmatpush1.msra.mxu0 0.0
  %691 = vmatprep.subr.mxu0 0.0
  %692 = vmatpush1.msra.mxu0 0.0
  %693 = vmatprep.subr.mxu0 0.0
  %694 = vmatpush1.msra.mxu0 0.0
  %695 = vmatprep.subr.mxu0 0.0
  %696 = vmatpush1.msra.mxu0 0.0
  %697 = vmatprep.subr.mxu0 0.0
  %698 = vmatpush1.msra.mxu0 0.0
  %699 = vmatprep.subr.mxu0 0.0
  %700 = vmatpush1.msra.mxu0 0.0
  %701 = vmatprep.subr.mxu0 0.0
  %702 = vmatpush1.msra.mxu0 0.0
  %703 = vmatprep.subr.mxu0 0.0
  %704 = vmatpush1.msra.mxu0 0.0
  %705 = vmatprep.subr.mxu0 0.0
  %706 = vmatpush1.msra.mxu0 0.0
  %707 = vmatprep.subr.mxu0 0.0
  %708 = vmatpush1.msra.mxu0 0.0
  %709 = vmatprep.subr.mxu0 0.0
  %710 = vmatpush1.msra.mxu0 0.0
  %711 = vmatprep.subr.mxu0 0.0
  %712 = vmatpush1.msra.mxu0 0.0
  %713 = vmatprep.subr.mxu0 0.0
  %714 = vmatpush1.msra.mxu0 0.0
  %715 = vmatprep.subr.mxu0 0.0
  %716 = vmatpush1.msra.mxu0 0.0
  %717 = vmatprep.subr.mxu0 0.0
  %718 = vmatpush1.msra.mxu0 0.0
  %719 = vmatprep.subr.mxu0 0.0
  %720 = vmatpush1.msra.mxu0 0.0
  %721 = vmatprep.subr.mxu0 0.0
  %722 = vmatpush1.msra.mxu0 0.0
  %723 = vmatprep.subr.mxu0 0.0
  %724 = vmatpush1.msra.mxu0 0.0
  %725 = vmatprep.subr.mxu0 0.0
  %726 = vmatpush1.msra.mxu0 0.0
  %727 = vmatprep.subr.mxu0 0.0
  %728 = vmatpush1.msra.mxu0 0.0
  %729 = vmatprep.mubr.f32.mxu0 0.0
  %730 = vmatmul.mubr.f32.gmra.mrb[0].mxu0 %v663
  %v731 = vpop.f32.mrb[0].mxu0
  %v732 = vadd.f32 %v659, %v731
  %v733 = vpop.f32.mrb[0].mxu0
  %v734 = vadd.f32 %v659, %v733
  %735 = vdwg.mxu0
  %v736 = vsub.f32 %v48, %v732
  %v737 = vsub.f32 %v49, %v734
  %v738 = vmul.f32 %v736, %v736
  %v739 = vmul.f32 %v737, %v737
  %v740 = vadd.f32 %v738, %v739
  %741 = vadd.xlane.f32.xlu0 %v740
  %v742 = vpop.xlane.xlu0 %741
  %v743 = vrot.slane %v742, 4
  %v744 = vadd.f32 %v742, %v743
  %v745 = vrot.slane %v744, 2
  %v746 = vadd.f32 %v744, %v745
  %v747 = vrot.slane %v746, 1
  %v748 = vadd.f32 %v746, %v747
  %s749 = vtos %v748
  %v750 = vstv %s749
  %751 = vst [vmem:[%s13] sm:$0xff] %v750
  %v752 = vstv %s402
  %753 = vst [vmem:[%s14] sm:$0xff] %v752
  // Predicated region
  $region54: #{gaussian_diffusion_forward.11} parent=0 // pred_check
    _
  $region55: #{gaussian_diffusion_forward.11} parent=0 // pred_check_branch
    %755 = sbr.rel (0) target = $region57
  $region56: #{gaussian_diffusion_forward.11} parent=0 // pred_region
    _
  $region57: #{gaussian_diffusion_forward.11} parent=0 // pred_fallthru
    _
  // Predicated region
  $region58: #{gaussian_diffusion_forward.11} parent=0 // pred_check
    _
  $region59: #{gaussian_diffusion_forward.11} parent=0 // pred_check_branch
    %757 = sbr.rel (0) target = $region61
  $region60: #{gaussian_diffusion_forward.11} parent=0 // pred_region
    _
  $region61: #{gaussian_diffusion_forward.11} parent=0 // pred_fallthru
    _
  // Predicated region
  $region62: #{gaussian_diffusion_forward.11} parent=0 // pred_check
    _
  $region63: #{gaussian_diffusion_forward.11} parent=0 // pred_check_branch
    %759 = sbr.rel (0) target = $region65
  $region64: #{gaussian_diffusion_forward.11} parent=0 // pred_region
    _
  $region65: #{gaussian_diffusion_forward.11} parent=0 // pred_fallthru
    _
  // Predicated region
  $region66: #{gaussian_diffusion_forward.11} parent=0 // pred_check
    _
  $region67: #{gaussian_diffusion_forward.11} parent=0 // pred_check_branch
    %761 = sbr.rel (0) target = $region69
  $region68: #{gaussian_diffusion_forward.11} parent=0 // pred_region
    _
  $region69: #{gaussian_diffusion_forward.11} parent=0 // pred_fallthru
    _

</llo_original>
